<compile_context>
chip_gen: v7x
topology: tpu7x:2x2x1
jax: 0.10.0
libtpu: 0.0.40
codegen_flags: <defaults>
</compile_context>

<pallas_src>
import jax
import jax.numpy as jnp
from jax.experimental import pallas as pl
from jax.experimental.pallas import tpu as pltpu


def _round_up(x, m):
    return ((x + m - 1) // m) * m


def clam_sb_kernel(n_valid_ref,                       # scalar prefetch (SMEM)
                   h_ref, w_fc_ref, b_fc_ref,
                   w_a_ref, b_a_ref, w_b_ref, b_b_ref, w_c_ref,
                   w_cls_ref, b_cls_ref,
                   logits_ref,
                   m_sc, l_sc, acc_sc):
    tile_n = h_ref.shape[0]
    step = pl.program_id(0)

    @pl.when(step == 0)
    def _init():
        m_sc[...] = jnp.full_like(m_sc, -1e30)
        l_sc[...] = jnp.zeros_like(l_sc)
        acc_sc[...] = jnp.zeros_like(acc_sc)

    # fc: Linear(E, L1) + ReLU   (dropout=0 -> identity at inference)
    h1 = jnp.dot(h_ref[...], w_fc_ref[...],
                 preferred_element_type=jnp.float32) + b_fc_ref[...]
    h1 = jnp.maximum(h1, 0.0)                                    # (tile_n, L1) f32

    # Attn_Net_Gated (matmul inputs in compute dtype, everything else f32).
    h1_c = h1.astype(w_a_ref.dtype)
    a = jnp.tanh(jnp.dot(h1_c, w_a_ref[...],
                         preferred_element_type=jnp.float32) + b_a_ref[...])
    b = jax.nn.sigmoid(jnp.dot(h1_c, w_b_ref[...],
                               preferred_element_type=jnp.float32) + b_b_ref[...])

    # attention_c as a lane reduction instead of a 1-wide MXU matmul.
    # (b_c dropped: the softmax over instances is shift-invariant.)
    s = jnp.sum((a * b) * w_c_ref[...], axis=-1, keepdims=True)  # (tile_n, 1) f32

    # Mask the padded rows of the last tile.
    row = step * tile_n + jax.lax.broadcasted_iota(jnp.int32, (tile_n, 1), 0)
    s = jnp.where(row < n_valid_ref[0], s, -1e30)

    # Online softmax over instances + running M = softmax(s)^T @ h1.
    m_prev = m_sc[...]                                           # (1, 1)
    m_new = jnp.maximum(m_prev, jnp.max(s, axis=0, keepdims=True))
    alpha = jnp.exp(m_prev - m_new)                              # (1, 1)
    p = jnp.exp(s - m_new)                                       # (tile_n, 1)
    l_sc[...] = alpha * l_sc[...] + jnp.sum(p, axis=0, keepdims=True)
    acc_sc[...] = alpha * acc_sc[...] + jnp.sum(p * h1, axis=0, keepdims=True)
    m_sc[...] = m_new

    @pl.when(step == pl.num_programs(0) - 1)
    def _finalize():
        inv_l = pl.reciprocal(l_sc[...], approx=True)            # EUP slot
        m_bag = acc_sc[...] * inv_l                              # (1, L1)
        logits = jnp.dot(m_bag, w_cls_ref[...],
                         preferred_element_type=jnp.float32) + b_cls_ref[...]
        logits_ref[...] = logits.astype(logits_ref.dtype)


def clam_sb_forward(h, params, *, tile_n=2048, compute_dtype=jnp.float32):
    n, e = h.shape
    l1 = params["w_fc"].shape[1]
    d = params["w_a"].shape[1]
    c = params["w_cls"].shape[1]

    # Instance tiling: tile rows are a multiple of 16 (covers f32/bf16 sublane
    # packing); the last tile is masked inside the kernel via n_valid.
    tile_n = max(16, min(int(tile_n), _round_up(n, 16)))
    tile_n = _round_up(tile_n, 16)
    n_pad = _round_up(n, tile_n)
    num_tiles = n_pad // tile_n

    cdt = jnp.dtype(compute_dtype)
    h_p = jnp.pad(h, ((0, n_pad - n), (0, 0))).astype(cdt)
    w_fc = params["w_fc"].astype(cdt)
    w_a = params["w_a"].astype(cdt)
    w_b = params["w_b"].astype(cdt)
    b_fc = params["b_fc"].astype(jnp.float32)
    b_a = params["b_a"].astype(jnp.float32)
    b_b = params["b_b"].astype(jnp.float32)
    w_c_row = params["w_c"].reshape(1, d).astype(jnp.float32)
    # params["b_c"] intentionally unused: softmax over instances is shift-invariant.
    w_cls = params["w_cls"].astype(jnp.float32)
    b_cls = params["b_cls"].astype(jnp.float32)
    n_valid = jnp.array([n], dtype=jnp.int32)

    const = lambda i, n_ref: (0, 0)   # resident across the whole grid (DMA'd once)
    grid_spec = pltpu.PrefetchScalarGridSpec(
        num_scalar_prefetch=1,
        grid=(num_tiles,),
        in_specs=[
            pl.BlockSpec((tile_n, e), lambda i, n_ref: (i, 0)),   # h (streamed)
            pl.BlockSpec((e, l1), const),                         # w_fc
            pl.BlockSpec((1, l1), const),                         # b_fc
            pl.BlockSpec((l1, d), const),                         # w_a
            pl.BlockSpec((1, d), const),                          # b_a
            pl.BlockSpec((l1, d), const),                         # w_b
            pl.BlockSpec((1, d), const),                          # b_b
            pl.BlockSpec((1, d), const),                          # w_c (row vector)
            pl.BlockSpec((l1, c), const),                         # w_cls
            pl.BlockSpec((1, c), const),                          # b_cls
        ],
        out_specs=pl.BlockSpec((1, c), const),
        scratch_shapes=[
            pltpu.VMEM((1, 1), jnp.float32),    # running max m
            pltpu.VMEM((1, 1), jnp.float32),    # running sum l
            pltpu.VMEM((1, l1), jnp.float32),   # running A^T @ h1 accumulator
        ],
    )

    # Rough VMEM budget: double-buffered h tile + resident weights + intermediates.
    est = (2 * tile_n * e * cdt.itemsize
           + (e * l1 + 2 * l1 * d) * cdt.itemsize
           + (l1 + 3 * d + l1 * c + c) * 4
           + tile_n * (2 * l1 + 2 * d + 2) * 4)
    vmem_limit = int(min(max(2 * est, 16 * 2 ** 20), 48 * 2 ** 20))

    cost = pl.CostEstimate(
        flops=int(2 * n * (e * l1 + 2 * l1 * d + d + l1) + 2 * l1 * c),
        transcendentals=int(n * (2 * d + 1)),
        bytes_accessed=int(n_pad * e * cdt.itemsize
                           + (e * l1 + 2 * l1 * d) * cdt.itemsize
                           + (l1 + 3 * d + l1 * c + 2 * c) * 4),
    )

    return pl.pallas_call(
        clam_sb_kernel,
        out_shape=jax.ShapeDtypeStruct((1, c), jnp.float32),
        grid_spec=grid_spec,
        compiler_params=pltpu.CompilerParams(
            dimension_semantics=("arbitrary",),   # N carries the softmax reduction
            vmem_limit_bytes=vmem_limit,
        ),
        cost_estimate=cost,
    )(n_valid, h_p, w_fc, b_fc, w_a, b_a, w_b, b_b, w_c_row, w_cls, b_cls)


def init_params(key, embed_dim, l1, d, n_classes):
    ks = jax.random.split(key, 10)

    def lin(kw, kb, fan_in, fan_out):
        scale = 1.0 / jnp.sqrt(fan_in)
        w = jax.random.uniform(kw, (fan_in, fan_out), jnp.float32, -scale, scale)
        b = jax.random.uniform(kb, (1, fan_out), jnp.float32, -scale, scale)
        return w, b

    w_fc, b_fc = lin(ks[0], ks[1], embed_dim, l1)
    w_a, b_a = lin(ks[2], ks[3], l1, d)
    w_b, b_b = lin(ks[4], ks[5], l1, d)
    w_c, b_c = lin(ks[6], ks[7], d, 1)
    w_cls, b_cls = lin(ks[8], ks[9], l1, n_classes)
    return dict(w_fc=w_fc, b_fc=b_fc, w_a=w_a, b_a=b_a, w_b=w_b, b_b=b_b,
                w_c=w_c, b_c=b_c, w_cls=w_cls, b_cls=b_cls)


def reference_forward(h, p):
    h1 = jnp.maximum(h @ p["w_fc"] + p["b_fc"], 0.0)
    a = jnp.tanh(h1 @ p["w_a"] + p["b_a"])
    b = jax.nn.sigmoid(h1 @ p["w_b"] + p["b_b"])
    A = (a * b) @ p["w_c"] + p["b_c"]
    A = jax.nn.softmax(A.T, axis=1)
    M = A @ h1
    return M @ p["w_cls"] + p["b_cls"]


if __name__ == "__main__":
    # Small shapes consistent with the module structure (embed_dim -> L1 -> D -> 1).
    # N is deliberately not a multiple of the tile so the run exercises both the
    # multi-tile online-softmax accumulation (4 grid steps of 32 rows) and the
    # masking of the 28 padded rows in the last tile.
    N, EMBED_DIM, L1, D, N_CLASSES = 100, 32, 16, 8, 3

    key = jax.random.PRNGKey(0)
    k_h, k_p = jax.random.split(key)
    h = jax.random.normal(k_h, (N, EMBED_DIM), dtype=jnp.float32)
    params = init_params(k_p, EMBED_DIM, L1, D, N_CLASSES)

    ref = reference_forward(h, params)

    # f32 compute path.
    logits = clam_sb_forward(h, params, tile_n=32, compute_dtype=jnp.float32)
    jax.block_until_ready(logits)
    assert logits.shape == (1, N_CLASSES)
    assert jnp.allclose(logits, ref, atol=5e-3, rtol=5e-3), (logits, ref)

    # bf16 MXU-input path (f32 accumulation / softmax) - the v5e-oriented option.
    logits_bf16 = clam_sb_forward(h, params, tile_n=32, compute_dtype=jnp.bfloat16)
    jax.block_until_ready(logits_bf16)
    assert jnp.allclose(logits_bf16, ref, atol=5e-2, rtol=5e-2), (logits_bf16, ref)

    print("KERNEL_OK")
</pallas_src>

<mosaic_0001>
module attributes {stable_mosaic.version = 11 : i64} {
  func.func @clam_sb_kernel(%arg0: i32, %arg1: memref<1xi32, #tpu.memory_space<smem>>, %arg2: memref<32x32xf32, #tpu.memory_space<vmem>>, %arg3: memref<32x16xf32, #tpu.memory_space<vmem>>, %arg4: memref<1x16xf32, #tpu.memory_space<vmem>>, %arg5: memref<16x8xf32, #tpu.memory_space<vmem>>, %arg6: memref<1x8xf32, #tpu.memory_space<vmem>>, %arg7: memref<16x8xf32, #tpu.memory_space<vmem>>, %arg8: memref<1x8xf32, #tpu.memory_space<vmem>>, %arg9: memref<1x8xf32, #tpu.memory_space<vmem>>, %arg10: memref<16x3xf32, #tpu.memory_space<vmem>>, %arg11: memref<1x3xf32, #tpu.memory_space<vmem>>, %arg12: memref<1x3xf32, #tpu.memory_space<vmem>>, %arg13: memref<1x1xf32, #tpu.memory_space<vmem>>, %arg14: memref<1x1xf32, #tpu.memory_space<vmem>>, %arg15: memref<1x16xf32, #tpu.memory_space<vmem>>) attributes {dimension_semantics = [#tpu.dimension_semantics<arbitrary>], iteration_bounds = array<i64: 4>, scalar_prefetch = 1 : i64, scratch_operands = 3 : i64, tpu.core_type = #tpu.core_type<tc>, window_params = [{transform_indices = @transform_0, window_bounds = array<i64: 32, 32>}, {pipeline_mode = #tpu.pipeline_mode<synchronous>, transform_indices = @transform_1, window_bounds = array<i64: 32, 16>}, {pipeline_mode = #tpu.pipeline_mode<synchronous>, transform_indices = @transform_2, window_bounds = array<i64: 1, 16>}, {pipeline_mode = #tpu.pipeline_mode<synchronous>, transform_indices = @transform_3, window_bounds = array<i64: 16, 8>}, {pipeline_mode = #tpu.pipeline_mode<synchronous>, transform_indices = @transform_4, window_bounds = array<i64: 1, 8>}, {pipeline_mode = #tpu.pipeline_mode<synchronous>, transform_indices = @transform_5, window_bounds = array<i64: 16, 8>}, {pipeline_mode = #tpu.pipeline_mode<synchronous>, transform_indices = @transform_6, window_bounds = array<i64: 1, 8>}, {pipeline_mode = #tpu.pipeline_mode<synchronous>, transform_indices = @transform_7, window_bounds = array<i64: 1, 8>}, {pipeline_mode = #tpu.pipeline_mode<synchronous>, transform_indices = @transform_8, window_bounds = array<i64: 16, 3>}, {pipeline_mode = #tpu.pipeline_mode<synchronous>, transform_indices = @transform_9, window_bounds = array<i64: 1, 3>}, {pipeline_mode = #tpu.pipeline_mode<synchronous>, transform_indices = @transform_10, window_bounds = array<i64: 1, 3>}]} {
    %c0_i32 = arith.constant 0 : i32
    %0 = arith.cmpi eq, %arg0, %c0_i32 : i32
    %1 = arith.extui %0 : i1 to i32
    %c0_i32_0 = arith.constant 0 : i32
    %2 = arith.cmpi ne, %1, %c0_i32_0 : i32
    scf.if %2 {
      %cst_39 = arith.constant -1.000000e+30 : f32
      %70 = vector.broadcast %cst_39 : f32 to vector<1x1xf32>
      %c0_40 = arith.constant 0 : index
      %c0_41 = arith.constant 0 : index
      %71 = vector.load %arg13[%c0_40, %c0_41] : memref<1x1xf32, #tpu.memory_space<vmem>>, vector<1x1xf32>
      tpu.vector_store %arg13[%c0_40, %c0_41], %70 {strides = array<i32>} : memref<1x1xf32, #tpu.memory_space<vmem>>, vector<1x1xf32>,
      %cst_42 = arith.constant 0.000000e+00 : f32
      %72 = vector.broadcast %cst_42 : f32 to vector<1x1xf32>
      %c0_43 = arith.constant 0 : index
      %c0_44 = arith.constant 0 : index
      %73 = vector.load %arg14[%c0_43, %c0_44] : memref<1x1xf32, #tpu.memory_space<vmem>>, vector<1x1xf32>
      tpu.vector_store %arg14[%c0_43, %c0_44], %72 {strides = array<i32>} : memref<1x1xf32, #tpu.memory_space<vmem>>, vector<1x1xf32>,
      %cst_45 = arith.constant 0.000000e+00 : f32
      %74 = vector.broadcast %cst_45 : f32 to vector<1x16xf32>
      %c0_46 = arith.constant 0 : index
      %c0_47 = arith.constant 0 : index
      %75 = vector.load %arg15[%c0_46, %c0_47] : memref<1x16xf32, #tpu.memory_space<vmem>>, vector<1x16xf32>
      tpu.vector_store %arg15[%c0_46, %c0_47], %74 {strides = array<i32>} : memref<1x16xf32, #tpu.memory_space<vmem>>, vector<1x16xf32>,
    } else {
    }
    %c0 = arith.constant 0 : index
    %c0_1 = arith.constant 0 : index
    %3 = vector.load %arg2[%c0, %c0_1] : memref<32x32xf32, #tpu.memory_space<vmem>>, vector<32x32xf32>
    %c0_2 = arith.constant 0 : index
    %c0_3 = arith.constant 0 : index
    %4 = vector.load %arg3[%c0_2, %c0_3] : memref<32x16xf32, #tpu.memory_space<vmem>>, vector<32x16xf32>
    %cst = arith.constant dense<0.000000e+00> : vector<32x16xf32>
    %5 = tpu.matmul %3, %4, %cst {dimension_numbers = #tpu.dot_dimension_numbers<[1], [0], [0], [1], [0, 0, 1, 1], [], []>} : vector<32x32xf32>, vector<32x16xf32>, vector<32x16xf32> -> vector<32x16xf32>
    %c0_4 = arith.constant 0 : index
    %c0_5 = arith.constant 0 : index
    %6 = vector.load %arg4[%c0_4, %c0_5] : memref<1x16xf32, #tpu.memory_space<vmem>>, vector<1x16xf32>
    %7 = vector.broadcast %6 : vector<1x16xf32> to vector<32x16xf32>
    %8 = arith.addf %5, %7 : vector<32x16xf32>
    %cst_6 = arith.constant 0.000000e+00 : f32
    %9 = vector.broadcast %cst_6 : f32 to vector<32x16xf32>
    %10 = arith.maximumf %8, %9 : vector<32x16xf32>
    %c0_7 = arith.constant 0 : index
    %c0_8 = arith.constant 0 : index
    %11 = vector.load %arg5[%c0_7, %c0_8] : memref<16x8xf32, #tpu.memory_space<vmem>>, vector<16x8xf32>
    %cst_9 = arith.constant dense<0.000000e+00> : vector<32x8xf32>
    %12 = tpu.matmul %10, %11, %cst_9 {dimension_numbers = #tpu.dot_dimension_numbers<[1], [0], [0], [1], [0, 0, 1, 1], [], []>} : vector<32x16xf32>, vector<16x8xf32>, vector<32x8xf32> -> vector<32x8xf32>
    %c0_10 = arith.constant 0 : index
    %c0_11 = arith.constant 0 : index
    %13 = vector.load %arg6[%c0_10, %c0_11] : memref<1x8xf32, #tpu.memory_space<vmem>>, vector<1x8xf32>
    %14 = vector.broadcast %13 : vector<1x8xf32> to vector<32x8xf32>
    %15 = arith.addf %12, %14 : vector<32x8xf32>
    %16 = math.tanh %15 : vector<32x8xf32>
    %c0_12 = arith.constant 0 : index
    %c0_13 = arith.constant 0 : index
    %17 = vector.load %arg7[%c0_12, %c0_13] : memref<16x8xf32, #tpu.memory_space<vmem>>, vector<16x8xf32>
    %cst_14 = arith.constant dense<0.000000e+00> : vector<32x8xf32>
    %18 = tpu.matmul %10, %17, %cst_14 {dimension_numbers = #tpu.dot_dimension_numbers<[1], [0], [0], [1], [0, 0, 1, 1], [], []>} : vector<32x16xf32>, vector<16x8xf32>, vector<32x8xf32> -> vector<32x8xf32>
    %c0_15 = arith.constant 0 : index
    %c0_16 = arith.constant 0 : index
    %19 = vector.load %arg8[%c0_15, %c0_16] : memref<1x8xf32, #tpu.memory_space<vmem>>, vector<1x8xf32>
    %20 = vector.broadcast %19 : vector<1x8xf32> to vector<32x8xf32>
    %21 = arith.addf %18, %20 : vector<32x8xf32>
    %22 = arith.negf %21 : vector<32x8xf32>
    %23 = math.exp %22 : vector<32x8xf32>
    %cst_17 = arith.constant 1.000000e+00 : f32
    %24 = vector.broadcast %cst_17 : f32 to vector<32x8xf32>
    %25 = arith.addf %24, %23 : vector<32x8xf32>
    %26 = arith.divf %24, %25 : vector<32x8xf32>
    %27 = arith.mulf %16, %26 : vector<32x8xf32>
    %c0_18 = arith.constant 0 : index
    %c0_19 = arith.constant 0 : index
    %28 = vector.load %arg9[%c0_18, %c0_19] : memref<1x8xf32, #tpu.memory_space<vmem>>, vector<1x8xf32>
    %29 = vector.broadcast %28 : vector<1x8xf32> to vector<32x8xf32>
    %30 = arith.mulf %27, %29 : vector<32x8xf32>
    %cst_20 = arith.constant dense<0.000000e+00> : vector<32xf32>
    %31 = vector.multi_reduction <add>, %30, %cst_20 [1] : vector<32x8xf32> to vector<32xf32>
    %32 = vector.shape_cast %31 : vector<32xf32> to vector<32x1xf32>
    %c32_i32 = arith.constant 32 : i32
    %33 = arith.muli %arg0, %c32_i32 : i32
    %34 = tpu.iota {dimensions = array<i32: 0>} : vector<32x1xi32>
    %35 = vector.broadcast %33 : i32 to vector<32x1xi32>
    %36 = arith.addi %35, %34 : vector<32x1xi32>
    %c0_21 = arith.constant 0 : index
    %37 = memref.load %arg1[%c0_21] : memref<1xi32, #tpu.memory_space<smem>>
    %38 = vector.broadcast %37 : i32 to vector<32x1xi32>
    %39 = arith.cmpi slt, %36, %38 : vector<32x1xi32>
    %cst_22 = arith.constant -1.000000e+30 : f32
    %40 = vector.broadcast %cst_22 : f32 to vector<32x1xf32>
    %41 = arith.select %39, %32, %40 : vector<32x1xi1>, vector<32x1xf32>
    %c0_23 = arith.constant 0 : index
    %c0_24 = arith.constant 0 : index
    %42 = vector.load %arg13[%c0_23, %c0_24] : memref<1x1xf32, #tpu.memory_space<vmem>>, vector<1x1xf32>
    %cst_25 = arith.constant dense<0xFF800000> : vector<1xf32>
    %43 = vector.multi_reduction <maximumf>, %41, %cst_25 [0] : vector<32x1xf32> to vector<1xf32>
    %44 = vector.shape_cast %43 : vector<1xf32> to vector<1x1xf32>
    %45 = arith.maximumf %42, %44 : vector<1x1xf32>
    %46 = arith.subf %42, %45 : vector<1x1xf32>
    %47 = math.exp %46 : vector<1x1xf32>
    %48 = vector.broadcast %45 : vector<1x1xf32> to vector<32x1xf32>
    %49 = arith.subf %41, %48 : vector<32x1xf32>
    %50 = math.exp %49 : vector<32x1xf32>
    %c0_26 = arith.constant 0 : index
    %c0_27 = arith.constant 0 : index
    %51 = vector.load %arg14[%c0_26, %c0_27] : memref<1x1xf32, #tpu.memory_space<vmem>>, vector<1x1xf32>
    %52 = arith.mulf %47, %51 : vector<1x1xf32>
    %cst_28 = arith.constant dense<0.000000e+00> : vector<1xf32>
    %53 = vector.multi_reduction <add>, %50, %cst_28 [0] : vector<32x1xf32> to vector<1xf32>
    %54 = vector.shape_cast %53 : vector<1xf32> to vector<1x1xf32>
    %55 = arith.addf %52, %54 : vector<1x1xf32>
    %c0_29 = arith.constant 0 : index
    %c0_30 = arith.constant 0 : index
    %56 = vector.load %arg14[%c0_29, %c0_30] : memref<1x1xf32, #tpu.memory_space<vmem>>, vector<1x1xf32>
    tpu.vector_store %arg14[%c0_29, %c0_30], %55 {strides = array<i32>} : memref<1x1xf32, #tpu.memory_space<vmem>>, vector<1x1xf32>,
    %c0_31 = arith.constant 0 : index
    %c0_32 = arith.constant 0 : index
    %57 = vector.load %arg15[%c0_31, %c0_32] : memref<1x16xf32, #tpu.memory_space<vmem>>, vector<1x16xf32>
    %58 = vector.broadcast %47 : vector<1x1xf32> to vector<1x16xf32>
    %59 = arith.mulf %58, %57 : vector<1x16xf32>
    %60 = vector.broadcast %50 : vector<32x1xf32> to vector<32x16xf32>
    %61 = arith.mulf %60, %10 : vector<32x16xf32>
    %cst_33 = arith.constant dense<0.000000e+00> : vector<16xf32>
    %62 = vector.multi_reduction <add>, %61, %cst_33 [0] : vector<32x16xf32> to vector<16xf32>
    %63 = vector.shape_cast %62 : vector<16xf32> to vector<1x16xf32>
    %64 = arith.addf %59, %63 : vector<1x16xf32>
    %c0_34 = arith.constant 0 : index
    %c0_35 = arith.constant 0 : index
    %65 = vector.load %arg15[%c0_34, %c0_35] : memref<1x16xf32, #tpu.memory_space<vmem>>, vector<1x16xf32>
    tpu.vector_store %arg15[%c0_34, %c0_35], %64 {strides = array<i32>} : memref<1x16xf32, #tpu.memory_space<vmem>>, vector<1x16xf32>,
    %c0_36 = arith.constant 0 : index
    %c0_37 = arith.constant 0 : index
    %66 = vector.load %arg13[%c0_36, %c0_37] : memref<1x1xf32, #tpu.memory_space<vmem>>, vector<1x1xf32>
    tpu.vector_store %arg13[%c0_36, %c0_37], %45 {strides = array<i32>} : memref<1x1xf32, #tpu.memory_space<vmem>>, vector<1x1xf32>,
    %c3_i32 = arith.constant 3 : i32
    %67 = arith.cmpi eq, %arg0, %c3_i32 : i32
    %68 = arith.extui %67 : i1 to i32
    %c0_i32_38 = arith.constant 0 : i32
    %69 = arith.cmpi ne, %68, %c0_i32_38 : i32
    scf.if %69 {
      %c0_39 = arith.constant 0 : index
      %c0_40 = arith.constant 0 : index
      %70 = vector.load %arg14[%c0_39, %c0_40] : memref<1x1xf32, #tpu.memory_space<vmem>>, vector<1x1xf32>
      %71 = tpu.reciprocal %70 {approx = true} : vector<1x1xf32> -> vector<1x1xf32>
      %c0_41 = arith.constant 0 : index
      %c0_42 = arith.constant 0 : index
      %72 = vector.load %arg15[%c0_41, %c0_42] : memref<1x16xf32, #tpu.memory_space<vmem>>, vector<1x16xf32>
      %73 = vector.broadcast %71 : vector<1x1xf32> to vector<1x16xf32>
      %74 = arith.mulf %72, %73 : vector<1x16xf32>
      %c0_43 = arith.constant 0 : index
      %c0_44 = arith.constant 0 : index
      %75 = vector.load %arg10[%c0_43, %c0_44] : memref<16x3xf32, #tpu.memory_space<vmem>>, vector<16x3xf32>
      %cst_45 = arith.constant dense<0.000000e+00> : vector<1x3xf32>
      %76 = tpu.matmul %74, %75, %cst_45 {dimension_numbers = #tpu.dot_dimension_numbers<[1], [0], [0], [1], [0, 0, 1, 1], [], []>} : vector<1x16xf32>, vector<16x3xf32>, vector<1x3xf32> -> vector<1x3xf32>
      %c0_46 = arith.constant 0 : index
      %c0_47 = arith.constant 0 : index
      %77 = vector.load %arg11[%c0_46, %c0_47] : memref<1x3xf32, #tpu.memory_space<vmem>>, vector<1x3xf32>
      %78 = arith.addf %76, %77 : vector<1x3xf32>
      %c0_48 = arith.constant 0 : index
      %c0_49 = arith.constant 0 : index
      %79 = vector.load %arg12[%c0_48, %c0_49] : memref<1x3xf32, #tpu.memory_space<vmem>>, vector<1x3xf32>
      tpu.vector_store %arg12[%c0_48, %c0_49], %78 {strides = array<i32>} : memref<1x3xf32, #tpu.memory_space<vmem>>, vector<1x3xf32>,
    } else {
    }
    return
  }
  func.func @transform_0(%arg0: i32, %arg1: memref<1xi32, #tpu.memory_space<smem>>) -> (i32, i32) {
    %c0_i32 = arith.constant 0 : i32
    %c0_i32_0 = arith.constant 0 : i32
    return %arg0, %c0_i32 : i32, i32
  }
  func.func @transform_1(%arg0: i32, %arg1: memref<1xi32, #tpu.memory_space<smem>>) -> (i32, i32) {
    %c0_i32 = arith.constant 0 : i32
    %c0_i32_0 = arith.constant 0 : i32
    %c0_i32_1 = arith.constant 0 : i32
    return %c0_i32, %c0_i32_0 : i32, i32
  }
  func.func @transform_2(%arg0: i32, %arg1: memref<1xi32, #tpu.memory_space<smem>>) -> (i32, i32) {
    %c0_i32 = arith.constant 0 : i32
    %c0_i32_0 = arith.constant 0 : i32
    %c0_i32_1 = arith.constant 0 : i32
    return %c0_i32, %c0_i32_0 : i32, i32
  }
  func.func @transform_3(%arg0: i32, %arg1: memref<1xi32, #tpu.memory_space<smem>>) -> (i32, i32) {
    %c0_i32 = arith.constant 0 : i32
    %c0_i32_0 = arith.constant 0 : i32
    %c0_i32_1 = arith.constant 0 : i32
    return %c0_i32, %c0_i32_0 : i32, i32
  }
  func.func @transform_4(%arg0: i32, %arg1: memref<1xi32, #tpu.memory_space<smem>>) -> (i32, i32) {
    %c0_i32 = arith.constant 0 : i32
    %c0_i32_0 = arith.constant 0 : i32
    %c0_i32_1 = arith.constant 0 : i32
    return %c0_i32, %c0_i32_0 : i32, i32
  }
  func.func @transform_5(%arg0: i32, %arg1: memref<1xi32, #tpu.memory_space<smem>>) -> (i32, i32) {
    %c0_i32 = arith.constant 0 : i32
    %c0_i32_0 = arith.constant 0 : i32
    %c0_i32_1 = arith.constant 0 : i32
    return %c0_i32, %c0_i32_0 : i32, i32
  }
  func.func @transform_6(%arg0: i32, %arg1: memref<1xi32, #tpu.memory_space<smem>>) -> (i32, i32) {
    %c0_i32 = arith.constant 0 : i32
    %c0_i32_0 = arith.constant 0 : i32
    %c0_i32_1 = arith.constant 0 : i32
    return %c0_i32, %c0_i32_0 : i32, i32
  }
  func.func @transform_7(%arg0: i32, %arg1: memref<1xi32, #tpu.memory_space<smem>>) -> (i32, i32) {
    %c0_i32 = arith.constant 0 : i32
    %c0_i32_0 = arith.constant 0 : i32
    %c0_i32_1 = arith.constant 0 : i32
    return %c0_i32, %c0_i32_0 : i32, i32
  }
  func.func @transform_8(%arg0: i32, %arg1: memref<1xi32, #tpu.memory_space<smem>>) -> (i32, i32) {
    %c0_i32 = arith.constant 0 : i32
    %c0_i32_0 = arith.constant 0 : i32
    %c0_i32_1 = arith.constant 0 : i32
    return %c0_i32, %c0_i32_0 : i32, i32
  }
  func.func @transform_9(%arg0: i32, %arg1: memref<1xi32, #tpu.memory_space<smem>>) -> (i32, i32) {
    %c0_i32 = arith.constant 0 : i32
    %c0_i32_0 = arith.constant 0 : i32
    %c0_i32_1 = arith.constant 0 : i32
    return %c0_i32, %c0_i32_0 : i32, i32
  }
  func.func @transform_10(%arg0: i32, %arg1: memref<1xi32, #tpu.memory_space<smem>>) -> (i32, i32) {
    %c0_i32 = arith.constant 0 : i32
    %c0_i32_0 = arith.constant 0 : i32
    %c0_i32_1 = arith.constant 0 : i32
    return %c0_i32, %c0_i32_0 : i32, i32
  }
}

</mosaic_0001>

<llo_original>
// kernel: tpu_custom_call.1
$region0: #{tpu_custom_call.1}
  #allocation0 [shape = 'u32[]', space=smem, size = 0x4, offset = 0x4, fixed_abs, tag = 'smem constant byte address 0x4 - core index']
  #allocation1 [shape = 'u32[144,128]{1,0:T(1,128)}', space=vmem, size = 0x12000, scoped, tag = 'internal scratch']
  #allocation2 [shape = 'f32[1,1]{1,0:T(1,128)}', space=vmem, size = 0x200, scoped, tag = 'scratch operand']
  #allocation3 [shape = 'f32[1,1]{1,0:T(1,128)}', space=vmem, size = 0x200, scoped, tag = 'scratch operand']
  #allocation4 [shape = 'f32[1,16]{1,0:T(1,128)}', space=vmem, size = 0x200, scoped, tag = 'scratch operand']
  #allocation5 [shape = 's32[1]{0}', space=sflag, size = 0x4, scoped, tag = 'scoped memory for tpu_custom_call.1']
  #allocation6 [shape = 's32[1]{0:T(128)S(6)}', space=smem, size = 0x200, scoped, tag = 'prefetched SMEM operand 0']
  %s0 = inlined_call_operand.<no memory space> [shape: s32[1], index: 0, kind: input, shape index: {}]
  %s1 = inlined_call_operand.vmem [shape: f32[128,32], index: 1, kind: input, shape index: {}]
  %s2 = inlined_call_operand.vmem [shape: f32[32,16], index: 2, kind: input, shape index: {}]
  %s3 = inlined_call_operand.vmem [shape: f32[1,16], index: 3, kind: input, shape index: {}]
  %s4 = inlined_call_operand.vmem [shape: f32[16,8], index: 4, kind: input, shape index: {}]
  %s5 = inlined_call_operand.vmem [shape: f32[1,8], index: 5, kind: input, shape index: {}]
  %s6 = inlined_call_operand.vmem [shape: f32[16,8], index: 6, kind: input, shape index: {}]
  %s7 = inlined_call_operand.vmem [shape: f32[1,8], index: 7, kind: input, shape index: {}]
  %s8 = inlined_call_operand.vmem [shape: f32[1,8], index: 8, kind: input, shape index: {}]
  %s9 = inlined_call_operand.vmem [shape: f32[16,3], index: 9, kind: input, shape index: {}]
  %s10 = inlined_call_operand.vmem [shape: f32[1,3], index: 10, kind: input, shape index: {}]
  %s11 = inlined_call_operand.hbm [shape: f32[1,3], index: 11, kind: output, shape index: {}]
  %s12 = sld [smem:[#allocation0]]
  $region81: #{tpu_custom_call.1} parent=0
    _
  %s14 = ssub.s32 1, %s12
  %s15 = scalar_select 0, %s14, %s12
  %16 = sst [smem:[#allocation6]] %s0
  $region1: #{tpu_custom_call.1} parent=0
    #allocation7 [shape = 'u8[512]{0}', space=vmem, size = 0x400, scoped, tag = 'output window, operand 0, single buffered']
    #allocation8 [shape = 's32[2]{0}', space=sflag, size = 0x8, scoped, tag = 'scoped memory for tpu_custom_call.1']
    %17 = vsyncpa [#allocation8], 0
    loop: start=0, step=1, limit=6
    $region2: #{tpu_custom_call.1} parent=1 // loop_pre_header
      _
    $region3: #{tpu_custom_call.1} parent=1 // loop_header
      %s19 = sphi 0, %s23
      %p20 = scmp.ge.s32.totalorder %s19, 6
      %s29 = sphi 0, %s31
      %s32 = sphi 0, %s29
      %s33 = sphi 0, %s32
      %s49 = sphi 0, %s33
      %s53 = sphi 0, %s53
      %s55 = sphi 0, %s53
      %s56 = sphi 0, %s55
      %s70 = sphi 0, %s56
      %s74 = sphi 0, %s74
      %s76 = sphi 0, %s74
      %s77 = sphi 0, %s76
      %s91 = sphi 0, %s77
      %s95 = sphi 0, %s95
      %s97 = sphi 0, %s95
      %s98 = sphi 0, %s97
      %s112 = sphi 0, %s98
      %s116 = sphi 0, %s116
      %s118 = sphi 0, %s116
      %s119 = sphi 0, %s118
      %s133 = sphi 0, %s119
      %s137 = sphi 0, %s137
      %s139 = sphi 0, %s137
      %s140 = sphi 0, %s139
      %s154 = sphi 0, %s140
      %s158 = sphi 0, %s158
      %s160 = sphi 0, %s158
      %s161 = sphi 0, %s160
      %s175 = sphi 0, %s161
      %s179 = sphi 0, %s179
      %s181 = sphi 0, %s179
      %s182 = sphi 0, %s181
      %s196 = sphi 0, %s182
      %s200 = sphi 0, %s200
      %s202 = sphi 0, %s200
      %s203 = sphi 0, %s202
      %s217 = sphi 0, %s203
      %s221 = sphi 0, %s221
      %s223 = sphi 0, %s221
      %s224 = sphi 0, %s223
      %s238 = sphi 0, %s224
      %s242 = sphi 0, %s242
      %s244 = sphi 0, %s242
      %s245 = sphi 0, %s244
      %s259 = sphi 0, %s245
    $region4: #{tpu_custom_call.1} parent=1 // loop_header_branch
      %22 = sbr.rel (%p20) target = $region8
    $region5: #{tpu_custom_call.1} parent=1 // loop_body
      %s24 = ssub.s32 %s19, 1
      %s25 = ssub.s32 %s19, 2
      %s26 = sadd.s32 %s19, 1
      %s27 = ssub.s32 %s19, %s26
      %p28 = scmp.eq.s32.totalorder %s27, 0
      %s30 = sadd.s32 %s29, 1
      %s31 = scalar_select %p28, %s29, %s30
      %p34 = pneg %p28
      %p35 = scmp.eq.s32.totalorder %s19, 3
      %p36 = por %p34, %p35
      %p37 = scmp.ne.s32.totalorder %s29, %s32
      %p38 = scmp.eq.s32.totalorder %s19, 0
      %p39 = por %p37, %p38
      %p40 = scmp.ne.s32.totalorder %s29, %s32
      %p41 = scmp.eq.s32.totalorder %s24, 3
      %p42 = por %p40, %p41
      %p43 = scmp.ne.s32.totalorder %s32, %s33
      %p44 = scmp.eq.s32.totalorder %s24, 0
      %p45 = por %p43, %p44
      %p46 = scmp.ne.s32.totalorder %s32, %s33
      %p47 = scmp.eq.s32.totalorder %s25, 3
      %p48 = por %p46, %p47
      %p50 = scmp.ne.s32.totalorder %s33, %s49
      %p51 = scmp.eq.s32.totalorder %s25, 0
      %p52 = por %p50, %p51
      %s54 = sadd.s32 %s53, 1
      %p57 = scmp.eq.s32.totalorder %s19, 3
      %p58 = scmp.ne.s32.totalorder %s53, %s55
      %p59 = scmp.eq.s32.totalorder %s19, 0
      %p60 = por %p58, %p59
      %p61 = scmp.ne.s32.totalorder %s53, %s55
      %p62 = scmp.eq.s32.totalorder %s24, 3
      %p63 = por %p61, %p62
      %p64 = scmp.ne.s32.totalorder %s55, %s56
      %p65 = scmp.eq.s32.totalorder %s24, 0
      %p66 = por %p64, %p65
      %p67 = scmp.ne.s32.totalorder %s55, %s56
      %p68 = scmp.eq.s32.totalorder %s25, 3
      %p69 = por %p67, %p68
      %p71 = scmp.ne.s32.totalorder %s56, %s70
      %p72 = scmp.eq.s32.totalorder %s25, 0
      %p73 = por %p71, %p72
      %s75 = sadd.s32 %s74, 1
      %p78 = scmp.eq.s32.totalorder %s19, 3
      %p79 = scmp.ne.s32.totalorder %s74, %s76
      %p80 = scmp.eq.s32.totalorder %s19, 0
      %p81 = por %p79, %p80
      %p82 = scmp.ne.s32.totalorder %s74, %s76
      %p83 = scmp.eq.s32.totalorder %s24, 3
      %p84 = por %p82, %p83
      %p85 = scmp.ne.s32.totalorder %s76, %s77
      %p86 = scmp.eq.s32.totalorder %s24, 0
      %p87 = por %p85, %p86
      %p88 = scmp.ne.s32.totalorder %s76, %s77
      %p89 = scmp.eq.s32.totalorder %s25, 3
      %p90 = por %p88, %p89
      %p92 = scmp.ne.s32.totalorder %s77, %s91
      %p93 = scmp.eq.s32.totalorder %s25, 0
      %p94 = por %p92, %p93
      %s96 = sadd.s32 %s95, 1
      %p99 = scmp.eq.s32.totalorder %s19, 3
      %p100 = scmp.ne.s32.totalorder %s95, %s97
      %p101 = scmp.eq.s32.totalorder %s19, 0
      %p102 = por %p100, %p101
      %p103 = scmp.ne.s32.totalorder %s95, %s97
      %p104 = scmp.eq.s32.totalorder %s24, 3
      %p105 = por %p103, %p104
      %p106 = scmp.ne.s32.totalorder %s97, %s98
      %p107 = scmp.eq.s32.totalorder %s24, 0
      %p108 = por %p106, %p107
      %p109 = scmp.ne.s32.totalorder %s97, %s98
      %p110 = scmp.eq.s32.totalorder %s25, 3
      %p111 = por %p109, %p110
      %p113 = scmp.ne.s32.totalorder %s98, %s112
      %p114 = scmp.eq.s32.totalorder %s25, 0
      %p115 = por %p113, %p114
      %s117 = sadd.s32 %s116, 1
      %p120 = scmp.eq.s32.totalorder %s19, 3
      %p121 = scmp.ne.s32.totalorder %s116, %s118
      %p122 = scmp.eq.s32.totalorder %s19, 0
      %p123 = por %p121, %p122
      %p124 = scmp.ne.s32.totalorder %s116, %s118
      %p125 = scmp.eq.s32.totalorder %s24, 3
      %p126 = por %p124, %p125
      %p127 = scmp.ne.s32.totalorder %s118, %s119
      %p128 = scmp.eq.s32.totalorder %s24, 0
      %p129 = por %p127, %p128
      %p130 = scmp.ne.s32.totalorder %s118, %s119
      %p131 = scmp.eq.s32.totalorder %s25, 3
      %p132 = por %p130, %p131
      %p134 = scmp.ne.s32.totalorder %s119, %s133
      %p135 = scmp.eq.s32.totalorder %s25, 0
      %p136 = por %p134, %p135
      %s138 = sadd.s32 %s137, 1
      %p141 = scmp.eq.s32.totalorder %s19, 3
      %p142 = scmp.ne.s32.totalorder %s137, %s139
      %p143 = scmp.eq.s32.totalorder %s19, 0
      %p144 = por %p142, %p143
      %p145 = scmp.ne.s32.totalorder %s137, %s139
      %p146 = scmp.eq.s32.totalorder %s24, 3
      %p147 = por %p145, %p146
      %p148 = scmp.ne.s32.totalorder %s139, %s140
      %p149 = scmp.eq.s32.totalorder %s24, 0
      %p150 = por %p148, %p149
      %p151 = scmp.ne.s32.totalorder %s139, %s140
      %p152 = scmp.eq.s32.totalorder %s25, 3
      %p153 = por %p151, %p152
      %p155 = scmp.ne.s32.totalorder %s140, %s154
      %p156 = scmp.eq.s32.totalorder %s25, 0
      %p157 = por %p155, %p156
      %s159 = sadd.s32 %s158, 1
      %p162 = scmp.eq.s32.totalorder %s19, 3
      %p163 = scmp.ne.s32.totalorder %s158, %s160
      %p164 = scmp.eq.s32.totalorder %s19, 0
      %p165 = por %p163, %p164
      %p166 = scmp.ne.s32.totalorder %s158, %s160
      %p167 = scmp.eq.s32.totalorder %s24, 3
      %p168 = por %p166, %p167
      %p169 = scmp.ne.s32.totalorder %s160, %s161
      %p170 = scmp.eq.s32.totalorder %s24, 0
      %p171 = por %p169, %p170
      %p172 = scmp.ne.s32.totalorder %s160, %s161
      %p173 = scmp.eq.s32.totalorder %s25, 3
      %p174 = por %p172, %p173
      %p176 = scmp.ne.s32.totalorder %s161, %s175
      %p177 = scmp.eq.s32.totalorder %s25, 0
      %p178 = por %p176, %p177
      %s180 = sadd.s32 %s179, 1
      %p183 = scmp.eq.s32.totalorder %s19, 3
      %p184 = scmp.ne.s32.totalorder %s179, %s181
      %p185 = scmp.eq.s32.totalorder %s19, 0
      %p186 = por %p184, %p185
      %p187 = scmp.ne.s32.totalorder %s179, %s181
      %p188 = scmp.eq.s32.totalorder %s24, 3
      %p189 = por %p187, %p188
      %p190 = scmp.ne.s32.totalorder %s181, %s182
      %p191 = scmp.eq.s32.totalorder %s24, 0
      %p192 = por %p190, %p191
      %p193 = scmp.ne.s32.totalorder %s181, %s182
      %p194 = scmp.eq.s32.totalorder %s25, 3
      %p195 = por %p193, %p194
      %p197 = scmp.ne.s32.totalorder %s182, %s196
      %p198 = scmp.eq.s32.totalorder %s25, 0
      %p199 = por %p197, %p198
      %s201 = sadd.s32 %s200, 1
      %p204 = scmp.eq.s32.totalorder %s19, 3
      %p205 = scmp.ne.s32.totalorder %s200, %s202
      %p206 = scmp.eq.s32.totalorder %s19, 0
      %p207 = por %p205, %p206
      %p208 = scmp.ne.s32.totalorder %s200, %s202
      %p209 = scmp.eq.s32.totalorder %s24, 3
      %p210 = por %p208, %p209
      %p211 = scmp.ne.s32.totalorder %s202, %s203
      %p212 = scmp.eq.s32.totalorder %s24, 0
      %p213 = por %p211, %p212
      %p214 = scmp.ne.s32.totalorder %s202, %s203
      %p215 = scmp.eq.s32.totalorder %s25, 3
      %p216 = por %p214, %p215
      %p218 = scmp.ne.s32.totalorder %s203, %s217
      %p219 = scmp.eq.s32.totalorder %s25, 0
      %p220 = por %p218, %p219
      %s222 = sadd.s32 %s221, 1
      %p225 = scmp.eq.s32.totalorder %s19, 3
      %p226 = scmp.ne.s32.totalorder %s221, %s223
      %p227 = scmp.eq.s32.totalorder %s19, 0
      %p228 = por %p226, %p227
      %p229 = scmp.ne.s32.totalorder %s221, %s223
      %p230 = scmp.eq.s32.totalorder %s24, 3
      %p231 = por %p229, %p230
      %p232 = scmp.ne.s32.totalorder %s223, %s224
      %p233 = scmp.eq.s32.totalorder %s24, 0
      %p234 = por %p232, %p233
      %p235 = scmp.ne.s32.totalorder %s223, %s224
      %p236 = scmp.eq.s32.totalorder %s25, 3
      %p237 = por %p235, %p236
      %p239 = scmp.ne.s32.totalorder %s224, %s238
      %p240 = scmp.eq.s32.totalorder %s25, 0
      %p241 = por %p239, %p240
      %s243 = sadd.s32 %s242, 1
      %p246 = scmp.eq.s32.totalorder %s19, 3
      %p247 = scmp.ne.s32.totalorder %s242, %s244
      %p248 = scmp.eq.s32.totalorder %s19, 0
      %p249 = por %p247, %p248
      %p250 = scmp.ne.s32.totalorder %s242, %s244
      %p251 = scmp.eq.s32.totalorder %s24, 3
      %p252 = por %p250, %p251
      %p253 = scmp.ne.s32.totalorder %s244, %s245
      %p254 = scmp.eq.s32.totalorder %s24, 0
      %p255 = por %p253, %p254
      %p256 = scmp.ne.s32.totalorder %s244, %s245
      %p257 = scmp.eq.s32.totalorder %s25, 3
      %p258 = por %p256, %p257
      %p260 = scmp.ne.s32.totalorder %s245, %s259
      %p261 = scmp.eq.s32.totalorder %s25, 0
      %p262 = por %p260, %p261
      %p263 = scmp.le.s32.totalorder 1, %s19
      %p264 = scmp.lt.s32.totalorder %s19, 5
      %p265 = pnand %p263, %p264
      %p266 = pneg %p265
      // Predicated region
      $region9: #{tpu_custom_call.1} parent=5 // pred_check
        _
      $region10: #{tpu_custom_call.1} parent=5 // pred_check_branch
        %268 = sbr.rel (%p265) target = $region12
      $region11: #{tpu_custom_call.1} parent=5 // pred_region
        %s269 = ssub.s32 %s19, 1
        // Predicated region
        $region13: #{tpu_custom_call.1} parent=11 // pred_check
          %p270 = pneg %p66
        $region14: #{tpu_custom_call.1} parent=11 // pred_check_branch
          %272 = sbr.rel (%p270) target = $region16
        $region15: #{tpu_custom_call.1} parent=11 // pred_region
          _
        $region16: #{tpu_custom_call.1} parent=11 // pred_fallthru
          _
        // Predicated region
        $region17: #{tpu_custom_call.1} parent=11 // pred_check
          %p273 = pneg %p87
        $region18: #{tpu_custom_call.1} parent=11 // pred_check_branch
          %275 = sbr.rel (%p273) target = $region20
        $region19: #{tpu_custom_call.1} parent=11 // pred_region
          _
        $region20: #{tpu_custom_call.1} parent=11 // pred_fallthru
          _
        // Predicated region
        $region21: #{tpu_custom_call.1} parent=11 // pred_check
          %p276 = pneg %p108
        $region22: #{tpu_custom_call.1} parent=11 // pred_check_branch
          %278 = sbr.rel (%p276) target = $region24
        $region23: #{tpu_custom_call.1} parent=11 // pred_region
          _
        $region24: #{tpu_custom_call.1} parent=11 // pred_fallthru
          _
        // Predicated region
        $region25: #{tpu_custom_call.1} parent=11 // pred_check
          %p279 = pneg %p129
        $region26: #{tpu_custom_call.1} parent=11 // pred_check_branch
          %281 = sbr.rel (%p279) target = $region28
        $region27: #{tpu_custom_call.1} parent=11 // pred_region
          _
        $region28: #{tpu_custom_call.1} parent=11 // pred_fallthru
          _
        // Predicated region
        $region29: #{tpu_custom_call.1} parent=11 // pred_check
          %p282 = pneg %p150
        $region30: #{tpu_custom_call.1} parent=11 // pred_check_branch
          %284 = sbr.rel (%p282) target = $region32
        $region31: #{tpu_custom_call.1} parent=11 // pred_region
          _
        $region32: #{tpu_custom_call.1} parent=11 // pred_fallthru
          _
        // Predicated region
        $region33: #{tpu_custom_call.1} parent=11 // pred_check
          %p285 = pneg %p171
        $region34: #{tpu_custom_call.1} parent=11 // pred_check_branch
          %287 = sbr.rel (%p285) target = $region36
        $region35: #{tpu_custom_call.1} parent=11 // pred_region
          _
        $region36: #{tpu_custom_call.1} parent=11 // pred_fallthru
          _
        // Predicated region
        $region37: #{tpu_custom_call.1} parent=11 // pred_check
          %p288 = pneg %p192
        $region38: #{tpu_custom_call.1} parent=11 // pred_check_branch
          %290 = sbr.rel (%p288) target = $region40
        $region39: #{tpu_custom_call.1} parent=11 // pred_region
          _
        $region40: #{tpu_custom_call.1} parent=11 // pred_fallthru
          _
        // Predicated region
        $region41: #{tpu_custom_call.1} parent=11 // pred_check
          %p291 = pneg %p213
        $region42: #{tpu_custom_call.1} parent=11 // pred_check_branch
          %293 = sbr.rel (%p291) target = $region44
        $region43: #{tpu_custom_call.1} parent=11 // pred_region
          _
        $region44: #{tpu_custom_call.1} parent=11 // pred_fallthru
          _
        // Predicated region
        $region45: #{tpu_custom_call.1} parent=11 // pred_check
          %p294 = pneg %p234
        $region46: #{tpu_custom_call.1} parent=11 // pred_check_branch
          %296 = sbr.rel (%p294) target = $region48
        $region47: #{tpu_custom_call.1} parent=11 // pred_region
          _
        $region48: #{tpu_custom_call.1} parent=11 // pred_fallthru
          _
      $region12: #{tpu_custom_call.1} parent=5 // pred_fallthru
        _
      %p297 = scmp.lt.s32.totalorder %s19, 4
      // Predicated region
      $region49: #{tpu_custom_call.1} parent=5 // pred_check
        %p298 = pneg %p297
      $region50: #{tpu_custom_call.1} parent=5 // pred_check_branch
        %300 = sbr.rel (%p298) target = $region52
      $region51: #{tpu_custom_call.1} parent=5 // pred_region
        // Predicated region
        $region53: #{tpu_custom_call.1} parent=51 // pred_check
          %p301 = pneg %p39
        $region54: #{tpu_custom_call.1} parent=51 // pred_check_branch
          %303 = sbr.rel (%p301) target = $region56
        $region55: #{tpu_custom_call.1} parent=51 // pred_region
          %s304 = smul.u32 4, %s19
          %p305 = scmp.lt.s32.totalorder %s304, 15
          %s306 = scalar_select %p305, %s304, 15
          %s307 = smul.addr %s306, 8
          %s308 = scalar_lea.vmem %s1, %s307
          %s309 = smul.u32 4, %s19
        $region56: #{tpu_custom_call.1} parent=51 // pred_fallthru
          _
      $region52: #{tpu_custom_call.1} parent=5 // pred_fallthru
        _
      %p310 = scmp.le.s32.totalorder 1, %s19
      %p311 = scmp.lt.s32.totalorder %s19, 5
      %p312 = pnand %p310, %p311
      %p313 = pneg %p312
      // Predicated region
      $region57: #{tpu_custom_call.1} parent=5 // pred_check
        _
      $region58: #{tpu_custom_call.1} parent=5 // pred_check_branch
        %315 = sbr.rel (%p312) target = $region60
      $region59: #{tpu_custom_call.1} parent=5 // pred_region
        %s316 = ssub.s32 %s19, 1
        %s317 = smul.u32 4, %s24
        %p318 = scmp.lt.s32.totalorder %s317, 15
        %s319 = scalar_select %p318, %s317, 15
        %s320 = smul.addr %s319, 8
        %s321 = scalar_lea.vmem %s1, %s320
        %p322 = pneg %p45
        %p323 = pneg %p42
        %p324 = pneg %p66
        %p325 = pneg %p63
        %p326 = pneg %p87
        %p327 = pneg %p84
        %p328 = pneg %p108
        %p329 = pneg %p105
        %p330 = pneg %p129
        %p331 = pneg %p126
        %p332 = pneg %p150
        %p333 = pneg %p147
        %p334 = pneg %p171
        %p335 = pneg %p168
        %p336 = pneg %p192
        %p337 = pneg %p189
        %p338 = pneg %p213
        %p339 = pneg %p210
        %p340 = pneg %p234
        %p341 = pneg %p231
        %p342 = pneg %p255
        %p343 = pneg %p252
        %s344 = smul.u32 4, %s24
        %p345 = scmp.lt.s32.totalorder %s344, 15
        %s346 = scalar_select %p345, %s344, 15
        %s347 = smul.addr %s346, 8
        %s348 = scalar_lea.vmem %s1, %s347
        %s349 = smul.u32 4, %s24
        %p350 = scmp.eq.s32.totalorder %s24, 0
        // Predicated region
        $region61: #{tpu_custom_call.1} parent=59 // pred_check
          %p351 = pneg %p350
        $region62: #{tpu_custom_call.1} parent=59 // pred_check_branch
          %353 = sbr.rel (%p351) target = $region64
        $region63: #{tpu_custom_call.1} parent=59 // pred_region
          %vm354 = vcmask 0
          %355 = vst.msk [vmem:[#allocation2] sm:$0x1] %vm354, -1e+30
          %356 = vst.msk [vmem:[#allocation3] sm:$0x1] %vm354, 0.0
          %vm357 = vcmask 122880
          %358 = vst.msk [vmem:[#allocation4] sm:$0x1] %vm357, 0.0
        $region64: #{tpu_custom_call.1} parent=59 // pred_fallthru
          _
        %v359 = vld [vmem:[%s348] sm:$0xff]
        %v360 = vld [vmem:[%s348 + $0x8] sm:$0xff]
        %v361 = vld [vmem:[%s348 + $0x10] sm:$0xff]
        %v362 = vld [vmem:[%s348 + $0x18] sm:$0xff]
        %v363 = vld [vmem:[%s2] sm:$0xff]
        %v364 = vld [vmem:[%s2 + $0x8] sm:$0xff]
        %v365 = vld [vmem:[%s2 + $0x10] sm:$0xff]
        %v366 = vld [vmem:[%s2 + $0x18] sm:$0xff]
        %v367 = vld [vmem:[%s3] sm:$0x1]
        %v369 = vlaneseq
        %v370 = vshrl.u32 %v369, 7
        %v371 = vsub.s32 0, %v370
        %v372 = vrot.slane %v367, %v371
        %vm374 = vcmask 261120
        %v376 = vsel %vm374, %v359, 0
        %v379 = vsel %vm374, %v360, 0
        %v382 = vsel %vm374, %v361, 0
        %v385 = vsel %vm374, %v362, 0
        %387 = vmatprep.subr.mxu0 0.0
        %388 = vmatpush1.msra.mxu0 %v363
        %389 = vmatprep.subr.mxu0 0.0
        %390 = vmatpush1.msra.mxu0 %v364
        %391 = vmatprep.subr.mxu0 0.0
        %392 = vmatpush1.msra.mxu0 %v365
        %393 = vmatprep.subr.mxu0 0.0
        %394 = vmatpush1.msra.mxu0 %v366
        %395 = vmatprep.subr.mxu0 0.0
        %396 = vmatpush1.msra.mxu0 0.0
        %397 = vmatprep.subr.mxu0 0.0
        %398 = vmatpush1.msra.mxu0 0.0
        %399 = vmatprep.subr.mxu0 0.0
        %400 = vmatpush1.msra.mxu0 0.0
        %401 = vmatprep.subr.mxu0 0.0
        %402 = vmatpush1.msra.mxu0 0.0
        %403 = vmatprep.subr.mxu0 0.0
        %404 = vmatpush1.msra.mxu0 0.0
        %405 = vmatprep.subr.mxu0 0.0
        %406 = vmatpush1.msra.mxu0 0.0
        %407 = vmatprep.subr.mxu0 0.0
        %408 = vmatpush1.msra.mxu0 0.0
        %409 = vmatprep.subr.mxu0 0.0
        %410 = vmatpush1.msra.mxu0 0.0
        %411 = vmatprep.subr.mxu0 0.0
        %412 = vmatpush1.msra.mxu0 0.0
        %413 = vmatprep.subr.mxu0 0.0
        %414 = vmatpush1.msra.mxu0 0.0
        %415 = vmatprep.subr.mxu0 0.0
        %416 = vmatpush1.msra.mxu0 0.0
        %417 = vmatprep.subr.mxu0 0.0
        %418 = vmatpush1.msra.mxu0 0.0
        %419 = vmatprep.subr.mxu0 0.0
        %420 = vmatpush1.msra.mxu0 0.0
        %421 = vmatprep.subr.mxu0 0.0
        %422 = vmatpush1.msra.mxu0 0.0
        %423 = vmatprep.subr.mxu0 0.0
        %424 = vmatpush1.msra.mxu0 0.0
        %425 = vmatprep.subr.mxu0 0.0
        %426 = vmatpush1.msra.mxu0 0.0
        %427 = vmatprep.subr.mxu0 0.0
        %428 = vmatpush1.msra.mxu0 0.0
        %429 = vmatprep.subr.mxu0 0.0
        %430 = vmatpush1.msra.mxu0 0.0
        %431 = vmatprep.subr.mxu0 0.0
        %432 = vmatpush1.msra.mxu0 0.0
        %433 = vmatprep.subr.mxu0 0.0
        %434 = vmatpush1.msra.mxu0 0.0
        %435 = vmatprep.subr.mxu0 0.0
        %436 = vmatpush1.msra.mxu0 0.0
        %437 = vmatprep.subr.mxu0 0.0
        %438 = vmatpush1.msra.mxu0 0.0
        %439 = vmatprep.subr.mxu0 0.0
        %440 = vmatpush1.msra.mxu0 0.0
        %441 = vmatprep.subr.mxu0 0.0
        %442 = vmatpush1.msra.mxu0 0.0
        %443 = vmatprep.subr.mxu0 0.0
        %444 = vmatpush1.msra.mxu0 0.0
        %445 = vmatprep.subr.mxu0 0.0
        %446 = vmatpush1.msra.mxu0 0.0
        %447 = vmatprep.subr.mxu0 0.0
        %448 = vmatpush1.msra.mxu0 0.0
        %449 = vmatprep.subr.mxu0 0.0
        %450 = vmatpush1.msra.mxu0 0.0
        %451 = vmatprep.mubr.f32.mxu0 0.0
        %452 = vmatmul.mubr.f32.gmra.mrb[0].mxu0 %v376
        %v453 = vpop.f32.mrb[0].mxu0
        %v454 = vadd.f32 %v372, %v453
        %v455 = vpop.f32.mrb[0].mxu0
        %456 = vmatprep.mubr.f32.mxu0 0.0
        %457 = vmatmul.mubr.f32.gmra.mrb[0].mxu0 %v379
        %v458 = vpop.f32.mrb[0].mxu0
        %v459 = vadd.f32 %v372, %v458
        %v460 = vpop.f32.mrb[0].mxu0
        %461 = vmatprep.mubr.f32.mxu0 0.0
        %462 = vmatmul.mubr.f32.gmra.mrb[0].mxu0 %v382
        %v463 = vpop.f32.mrb[0].mxu0
        %v464 = vadd.f32 %v372, %v463
        %v465 = vpop.f32.mrb[0].mxu0
        %466 = vmatprep.mubr.f32.mxu0 0.0
        %467 = vmatmul.mubr.f32.gmra.mrb[0].mxu0 %v385
        %v468 = vpop.f32.mrb[0].mxu0
        %v469 = vadd.f32 %v372, %v468
        %v470 = vpop.f32.mrb[0].mxu0
        %471 = vdwg.mxu0
        %v472 = vmax.f32 %v454, 0.0
        %v473 = vmax.f32 %v459, 0.0
        %v474 = vmax.f32 %v464, 0.0
        %v475 = vmax.f32 %v469, 0.0
        %v476 = vld [vmem:[%s4] sm:$0xff]
        %v477 = vld [vmem:[%s4 + $0x8] sm:$0xff]
        %v478 = vld [vmem:[%s5] sm:$0x1]
        %v480 = vlaneseq
        %v481 = vshrl.u32 %v480, 7
        %v482 = vsub.s32 0, %v481
        %v483 = vrot.slane %v478, %v482
        %vm485 = vcmask 130048
        %v487 = vsel %vm485, %v472, 0
        %v490 = vsel %vm485, %v473, 0
        %v493 = vsel %vm485, %v474, 0
        %v496 = vsel %vm485, %v475, 0
        %498 = vmatprep.subr.mxu0 0.0
        %499 = vmatpush1.msra.mxu0 %v476
        %500 = vmatprep.subr.mxu0 0.0
        %501 = vmatpush1.msra.mxu0 %v477
        %502 = vmatprep.subr.mxu0 0.0
        %503 = vmatpush1.msra.mxu0 0.0
        %504 = vmatprep.subr.mxu0 0.0
        %505 = vmatpush1.msra.mxu0 0.0
        %506 = vmatprep.subr.mxu0 0.0
        %507 = vmatpush1.msra.mxu0 0.0
        %508 = vmatprep.subr.mxu0 0.0
        %509 = vmatpush1.msra.mxu0 0.0
        %510 = vmatprep.subr.mxu0 0.0
        %511 = vmatpush1.msra.mxu0 0.0
        %512 = vmatprep.subr.mxu0 0.0
        %513 = vmatpush1.msra.mxu0 0.0
        %514 = vmatprep.subr.mxu0 0.0
        %515 = vmatpush1.msra.mxu0 0.0
        %516 = vmatprep.subr.mxu0 0.0
        %517 = vmatpush1.msra.mxu0 0.0
        %518 = vmatprep.subr.mxu0 0.0
        %519 = vmatpush1.msra.mxu0 0.0
        %520 = vmatprep.subr.mxu0 0.0
        %521 = vmatpush1.msra.mxu0 0.0
        %522 = vmatprep.subr.mxu0 0.0
        %523 = vmatpush1.msra.mxu0 0.0
        %524 = vmatprep.subr.mxu0 0.0
        %525 = vmatpush1.msra.mxu0 0.0
        %526 = vmatprep.subr.mxu0 0.0
        %527 = vmatpush1.msra.mxu0 0.0
        %528 = vmatprep.subr.mxu0 0.0
        %529 = vmatpush1.msra.mxu0 0.0
        %530 = vmatprep.subr.mxu0 0.0
        %531 = vmatpush1.msra.mxu0 0.0
        %532 = vmatprep.subr.mxu0 0.0
        %533 = vmatpush1.msra.mxu0 0.0
        %534 = vmatprep.subr.mxu0 0.0
        %535 = vmatpush1.msra.mxu0 0.0
        %536 = vmatprep.subr.mxu0 0.0
        %537 = vmatpush1.msra.mxu0 0.0
        %538 = vmatprep.subr.mxu0 0.0
        %539 = vmatpush1.msra.mxu0 0.0
        %540 = vmatprep.subr.mxu0 0.0
        %541 = vmatpush1.msra.mxu0 0.0
        %542 = vmatprep.subr.mxu0 0.0
        %543 = vmatpush1.msra.mxu0 0.0
        %544 = vmatprep.subr.mxu0 0.0
        %545 = vmatpush1.msra.mxu0 0.0
        %546 = vmatprep.subr.mxu0 0.0
        %547 = vmatpush1.msra.mxu0 0.0
        %548 = vmatprep.subr.mxu0 0.0
        %549 = vmatpush1.msra.mxu0 0.0
        %550 = vmatprep.subr.mxu0 0.0
        %551 = vmatpush1.msra.mxu0 0.0
        %552 = vmatprep.subr.mxu0 0.0
        %553 = vmatpush1.msra.mxu0 0.0
        %554 = vmatprep.subr.mxu0 0.0
        %555 = vmatpush1.msra.mxu0 0.0
        %556 = vmatprep.subr.mxu0 0.0
        %557 = vmatpush1.msra.mxu0 0.0
        %558 = vmatprep.subr.mxu0 0.0
        %559 = vmatpush1.msra.mxu0 0.0
        %560 = vmatprep.subr.mxu0 0.0
        %561 = vmatpush1.msra.mxu0 0.0
        %562 = vmatprep.mubr.f32.mxu0 0.0
        %563 = vmatmul.mubr.f32.gmra.mrb[0].mxu0 %v487
        %v564 = vpop.f32.mrb[0].mxu0
        %v565 = vadd.f32 %v483, %v564
        %v566 = vpop.f32.mrb[0].mxu0
        %567 = vmatprep.mubr.f32.mxu0 0.0
        %568 = vmatmul.mubr.f32.gmra.mrb[0].mxu0 %v490
        %v569 = vpop.f32.mrb[0].mxu0
        %v570 = vadd.f32 %v483, %v569
        %v571 = vpop.f32.mrb[0].mxu0
        %572 = vmatprep.mubr.f32.mxu0 0.0
        %573 = vmatmul.mubr.f32.gmra.mrb[0].mxu0 %v493
        %v574 = vpop.f32.mrb[0].mxu0
        %v575 = vadd.f32 %v483, %v574
        %v576 = vpop.f32.mrb[0].mxu0
        %577 = vmatprep.mubr.f32.mxu0 0.0
        %578 = vmatmul.mubr.f32.gmra.mrb[0].mxu0 %v496
        %v579 = vpop.f32.mrb[0].mxu0
        %v580 = vadd.f32 %v483, %v579
        %v581 = vpop.f32.mrb[0].mxu0
        %582 = vdwg.mxu0
        %v583 = vtanh.pop %v565
        %v584 = vtanh.pop %v570
        %v585 = vtanh.pop %v575
        %v586 = vtanh.pop %v580
        %v587 = vld [vmem:[%s6] sm:$0xff]
        %v588 = vld [vmem:[%s6 + $0x8] sm:$0xff]
        %v589 = vld [vmem:[%s7] sm:$0x1]
        %v591 = vlaneseq
        %v592 = vshrl.u32 %v591, 7
        %v593 = vsub.s32 0, %v592
        %v594 = vrot.slane %v589, %v593
        %596 = vmatprep.subr.mxu0 0.0
        %597 = vmatpush1.msra.mxu0 %v587
        %598 = vmatprep.subr.mxu0 0.0
        %599 = vmatpush1.msra.mxu0 %v588
        %600 = vmatprep.subr.mxu0 0.0
        %601 = vmatpush1.msra.mxu0 0.0
        %602 = vmatprep.subr.mxu0 0.0
        %603 = vmatpush1.msra.mxu0 0.0
        %604 = vmatprep.subr.mxu0 0.0
        %605 = vmatpush1.msra.mxu0 0.0
        %606 = vmatprep.subr.mxu0 0.0
        %607 = vmatpush1.msra.mxu0 0.0
        %608 = vmatprep.subr.mxu0 0.0
        %609 = vmatpush1.msra.mxu0 0.0
        %610 = vmatprep.subr.mxu0 0.0
        %611 = vmatpush1.msra.mxu0 0.0
        %612 = vmatprep.subr.mxu0 0.0
        %613 = vmatpush1.msra.mxu0 0.0
        %614 = vmatprep.subr.mxu0 0.0
        %615 = vmatpush1.msra.mxu0 0.0
        %616 = vmatprep.subr.mxu0 0.0
        %617 = vmatpush1.msra.mxu0 0.0
        %618 = vmatprep.subr.mxu0 0.0
        %619 = vmatpush1.msra.mxu0 0.0
        %620 = vmatprep.subr.mxu0 0.0
        %621 = vmatpush1.msra.mxu0 0.0
        %622 = vmatprep.subr.mxu0 0.0
        %623 = vmatpush1.msra.mxu0 0.0
        %624 = vmatprep.subr.mxu0 0.0
        %625 = vmatpush1.msra.mxu0 0.0
        %626 = vmatprep.subr.mxu0 0.0
        %627 = vmatpush1.msra.mxu0 0.0
        %628 = vmatprep.subr.mxu0 0.0
        %629 = vmatpush1.msra.mxu0 0.0
        %630 = vmatprep.subr.mxu0 0.0
        %631 = vmatpush1.msra.mxu0 0.0
        %632 = vmatprep.subr.mxu0 0.0
        %633 = vmatpush1.msra.mxu0 0.0
        %634 = vmatprep.subr.mxu0 0.0
        %635 = vmatpush1.msra.mxu0 0.0
        %636 = vmatprep.subr.mxu0 0.0
        %637 = vmatpush1.msra.mxu0 0.0
        %638 = vmatprep.subr.mxu0 0.0
        %639 = vmatpush1.msra.mxu0 0.0
        %640 = vmatprep.subr.mxu0 0.0
        %641 = vmatpush1.msra.mxu0 0.0
        %642 = vmatprep.subr.mxu0 0.0
        %643 = vmatpush1.msra.mxu0 0.0
        %644 = vmatprep.subr.mxu0 0.0
        %645 = vmatpush1.msra.mxu0 0.0
        %646 = vmatprep.subr.mxu0 0.0
        %647 = vmatpush1.msra.mxu0 0.0
        %648 = vmatprep.subr.mxu0 0.0
        %649 = vmatpush1.msra.mxu0 0.0
        %650 = vmatprep.subr.mxu0 0.0
        %651 = vmatpush1.msra.mxu0 0.0
        %652 = vmatprep.subr.mxu0 0.0
        %653 = vmatpush1.msra.mxu0 0.0
        %654 = vmatprep.subr.mxu0 0.0
        %655 = vmatpush1.msra.mxu0 0.0
        %656 = vmatprep.subr.mxu0 0.0
        %657 = vmatpush1.msra.mxu0 0.0
        %658 = vmatprep.subr.mxu0 0.0
        %659 = vmatpush1.msra.mxu0 0.0
        %660 = vmatprep.mubr.f32.mxu0 0.0
        %661 = vmatmul.mubr.f32.gmra.mrb[0].mxu0 %v487
        %v662 = vpop.f32.mrb[0].mxu0
        %v663 = vadd.f32 %v594, %v662
        %v664 = vpop.f32.mrb[0].mxu0
        %665 = vmatprep.mubr.f32.mxu0 0.0
        %666 = vmatmul.mubr.f32.gmra.mrb[0].mxu0 %v490
        %v667 = vpop.f32.mrb[0].mxu0
        %v668 = vadd.f32 %v594, %v667
        %v669 = vpop.f32.mrb[0].mxu0
        %670 = vmatprep.mubr.f32.mxu0 0.0
        %671 = vmatmul.mubr.f32.gmra.mrb[0].mxu0 %v493
        %v672 = vpop.f32.mrb[0].mxu0
        %v673 = vadd.f32 %v594, %v672
        %v674 = vpop.f32.mrb[0].mxu0
        %675 = vmatprep.mubr.f32.mxu0 0.0
        %676 = vmatmul.mubr.f32.gmra.mrb[0].mxu0 %v496
        %v677 = vpop.f32.mrb[0].mxu0
        %v678 = vadd.f32 %v594, %v677
        %v679 = vpop.f32.mrb[0].mxu0
        %680 = vdwg.mxu0
        %v681 = vxor.u32 %v663, 2147483648
        %v682 = vxor.u32 %v668, 2147483648
        %v683 = vxor.u32 %v673, 2147483648
        %v684 = vxor.u32 %v678, 2147483648
        %v685 = vmul.f32 %v681, 1.442695
        %v686 = vpow.pop %v685
        %v687 = vmul.f32 %v682, 1.442695
        %v688 = vpow.pop %v687
        %v689 = vmul.f32 %v683, 1.442695
        %v690 = vpow.pop %v689
        %v691 = vmul.f32 %v684, 1.442695
        %v692 = vpow.pop %v691
        %v693 = vadd.f32 %v686, 1.0
        %v694 = vadd.f32 %v688, 1.0
        %v695 = vadd.f32 %v690, 1.0
        %v696 = vadd.f32 %v692, 1.0
        %v697 = vrcp.pop %v693
        %v698 = vmul.f32 1.0, %v697
        %v699 = vrcp.pop %v694
        %v700 = vmul.f32 1.0, %v699
        %v701 = vrcp.pop %v695
        %v702 = vmul.f32 1.0, %v701
        %v703 = vrcp.pop %v696
        %v704 = vmul.f32 1.0, %v703
        %v705 = vmul.f32 %v583, %v698
        %v706 = vmul.f32 %v584, %v700
        %v707 = vmul.f32 %v585, %v702
        %v708 = vmul.f32 %v586, %v704
        %v709 = vld [vmem:[%s8] sm:$0x1]
        %v711 = vlaneseq
        %v712 = vshrl.u32 %v711, 7
        %v713 = vsub.s32 0, %v712
        %v714 = vrot.slane %v709, %v713
        %v716 = vmul.f32 %v705, %v714
        %v717 = vmul.f32 %v706, %v714
        %v718 = vmul.f32 %v707, %v714
        %v719 = vmul.f32 %v708, %v714
        %vm720 = vcmask 64512
        %v721 = vsel %vm720, %v716, 0.0
        %722 = vadd.xlane.f32.xlu0 %v721
        %v723 = vpop.xlane.xlu0 %722
        %v724 = vsel %vm720, %v717, 0.0
        %725 = vadd.xlane.f32.xlu0 %v724
        %v726 = vpop.xlane.xlu0 %725
        %v727 = vsel %vm720, %v718, 0.0
        %728 = vadd.xlane.f32.xlu0 %v727
        %v729 = vpop.xlane.xlu0 %728
        %v730 = vsel %vm720, %v719, 0.0
        %731 = vadd.xlane.f32.xlu0 %v730
        %v732 = vpop.xlane.xlu0 %731
        %s733 = smul.u32 %s24, 32
        %v734 = vlaneseq
        %v735 = vshrl.u32 %v734, 7
        %v736 = vadd.s32 %v735, 8
        %v737 = vadd.s32 %v735, 16
        %v738 = vadd.s32 %v735, 24
        %v739 = vstv %s733
        %v740 = vadd.s32 %v739, %v735
        %v741 = vadd.s32 %v739, %v736
        %v742 = vadd.s32 %v739, %v737
        %v743 = vadd.s32 %v739, %v738
        %s744 = sld [smem:[#allocation6]]
        %v745 = vstv %s744
        %vm746 = vcmp.lt.s32.totalorder %v740, %v745
        %vm747 = vcmp.lt.s32.totalorder %v741, %v745
        %vm748 = vcmp.lt.s32.totalorder %v742, %v745
        %vm749 = vcmp.lt.s32.totalorder %v743, %v745
        %v750 = vsel %vm746, %v723, -1e+30
        %v751 = vsel %vm747, %v726, -1e+30
        %v752 = vsel %vm748, %v729, -1e+30
        %v753 = vsel %vm749, %v732, -1e+30
        %v754 = vld [vmem:[#allocation2] sm:$0x1]
        %v755 = vmax.f32 %v750, %v751
        %v756 = vmax.f32 %v752, %v753
        %v757 = vmax.f32 %v755, %v756
        %v758 = vrot.slane %v757, 4
        %v759 = vmax.f32 %v757, %v758
        %v760 = vrot.slane %v759, 2
        %v761 = vmax.f32 %v759, %v760
        %v762 = vrot.slane %v761, 1
        %v763 = vmax.f32 %v761, %v762
        %v764 = vmax.f32 %v754, %v763
        %v765 = vsub.f32 %v754, %v764
        %v766 = vmul.f32 %v765, 1.442695
        %v767 = vpow.pop %v766
        %v769 = vlaneseq
        %v770 = vshrl.u32 %v769, 7
        %v771 = vsub.s32 0, %v770
        %v772 = vrot.slane %v764, %v771
        %v774 = vsub.f32 %v750, %v772
        %v775 = vsub.f32 %v751, %v772
        %v776 = vsub.f32 %v752, %v772
        %v777 = vsub.f32 %v753, %v772
        %v778 = vmul.f32 %v774, 1.442695
        %v779 = vpow.pop %v778
        %v780 = vmul.f32 %v775, 1.442695
        %v781 = vpow.pop %v780
        %v782 = vmul.f32 %v776, 1.442695
        %v783 = vpow.pop %v782
        %v784 = vmul.f32 %v777, 1.442695
        %v785 = vpow.pop %v784
        %v786 = vld [vmem:[#allocation3] sm:$0x1]
        %v787 = vmul.f32 %v767, %v786
        %vm788 = vcmask 7168
        %v789 = vsel %vm788, %v779, 0.0
        %v790 = vsel %vm788, %v781, 0.0
        %v791 = vadd.f32 %v789, %v790
        %v792 = vsel %vm788, %v783, 0.0
        %v793 = vadd.f32 %v791, %v792
        %v794 = vsel %vm788, %v785, 0.0
        %v795 = vadd.f32 %v793, %v794
        %v796 = vrot.slane %v795, 4
        %v797 = vadd.f32 %v795, %v796
        %v798 = vrot.slane %v797, 2
        %v799 = vadd.f32 %v797, %v798
        %v800 = vrot.slane %v799, 1
        %v801 = vadd.f32 %v799, %v800
        %v802 = vadd.f32 %v787, %v801
        %vm803 = vcmask 0
        %804 = vst.msk [vmem:[#allocation3] sm:$0x1] %vm803, %v802
        %v805 = vld [vmem:[#allocation4] sm:$0x1]
        %807 = vset.pattern.permute.xlu0 0
        %808 = vperm.xlu0 %807, %v767
        %v809 = vpop.permute.xlu0 %808
        %v811 = vlaneseq
        %v812 = vshrl.u32 %v811, 7
        %v813 = vsub.s32 0, %v812
        %v814 = vrot.slane %v809, %v813
        %v815 = vmul.f32 %v814, %v805
        %817 = vset.pattern.permute.xlu0 0
        %818 = vperm.xlu0 %817, %v779
        %v819 = vpop.permute.xlu0 %818
        %822 = vset.pattern.permute.xlu0 0
        %823 = vperm.xlu0 %822, %v781
        %v824 = vpop.permute.xlu0 %823
        %827 = vset.pattern.permute.xlu0 0
        %828 = vperm.xlu0 %827, %v783
        %v829 = vpop.permute.xlu0 %828
        %832 = vset.pattern.permute.xlu0 0
        %833 = vperm.xlu0 %832, %v785
        %v834 = vpop.permute.xlu0 %833
        %v836 = vmul.f32 %v819, %v472
        %v837 = vmul.f32 %v824, %v473
        %v838 = vmul.f32 %v829, %v474
        %v839 = vmul.f32 %v834, %v475
        %v840 = vsel %vm485, %v836, 0.0
        %v841 = vsel %vm485, %v837, 0.0
        %v842 = vadd.f32 %v840, %v841
        %v843 = vsel %vm485, %v838, 0.0
        %v844 = vadd.f32 %v842, %v843
        %v845 = vsel %vm485, %v839, 0.0
        %v846 = vadd.f32 %v844, %v845
        %v847 = vrot.slane %v846, 4
        %v848 = vadd.f32 %v846, %v847
        %v849 = vrot.slane %v848, 2
        %v850 = vadd.f32 %v848, %v849
        %v851 = vrot.slane %v850, 1
        %v852 = vadd.f32 %v850, %v851
        %v853 = vadd.f32 %v815, %v852
        %vm854 = vcmask 122880
        %855 = vst.msk [vmem:[#allocation4] sm:$0x1] %vm854, %v853
        %856 = vst.msk [vmem:[#allocation2] sm:$0x1] %vm803, %v764
        %p857 = scmp.eq.s32.totalorder %s24, 3
        // Predicated region
        $region65: #{tpu_custom_call.1} parent=59 // pred_check
          %p858 = pneg %p857
        $region66: #{tpu_custom_call.1} parent=59 // pred_check_branch
          %860 = sbr.rel (%p858) target = $region68
        $region67: #{tpu_custom_call.1} parent=59 // pred_region
          %v861 = vld [vmem:[#allocation3] sm:$0x1]
          %v862 = vrcp.pop %v861
          %v863 = vld [vmem:[#allocation4] sm:$0x1]
          %865 = vset.pattern.permute.xlu0 0
          %866 = vperm.xlu0 %865, %v862
          %v867 = vpop.permute.xlu0 %866
          %v869 = vlaneseq
          %v870 = vshrl.u32 %v869, 7
          %v871 = vsub.s32 0, %v870
          %v872 = vrot.slane %v867, %v871
          %v873 = vmul.f32 %v863, %v872
          %v874 = vld [vmem:[%s9] sm:$0xff]
          %v875 = vld [vmem:[%s9 + $0x8] sm:$0xff]
          %v876 = vld [vmem:[%s10] sm:$0x1]
          %v878 = vsel %vm485, %v873, 0
          %880 = vmatprep.subr.mxu0 0.0
          %881 = vmatpush1.msra.mxu0 %v874
          %882 = vmatprep.subr.mxu0 0.0
          %883 = vmatpush1.msra.mxu0 %v875
          %884 = vmatprep.subr.mxu0 0.0
          %885 = vmatpush1.msra.mxu0 0.0
          %886 = vmatprep.subr.mxu0 0.0
          %887 = vmatpush1.msra.mxu0 0.0
          %888 = vmatprep.subr.mxu0 0.0
          %889 = vmatpush1.msra.mxu0 0.0
          %890 = vmatprep.subr.mxu0 0.0
          %891 = vmatpush1.msra.mxu0 0.0
          %892 = vmatprep.subr.mxu0 0.0
          %893 = vmatpush1.msra.mxu0 0.0
          %894 = vmatprep.subr.mxu0 0.0
          %895 = vmatpush1.msra.mxu0 0.0
          %896 = vmatprep.subr.mxu0 0.0
          %897 = vmatpush1.msra.mxu0 0.0
          %898 = vmatprep.subr.mxu0 0.0
          %899 = vmatpush1.msra.mxu0 0.0
          %900 = vmatprep.subr.mxu0 0.0
          %901 = vmatpush1.msra.mxu0 0.0
          %902 = vmatprep.subr.mxu0 0.0
          %903 = vmatpush1.msra.mxu0 0.0
          %904 = vmatprep.subr.mxu0 0.0
          %905 = vmatpush1.msra.mxu0 0.0
          %906 = vmatprep.subr.mxu0 0.0
          %907 = vmatpush1.msra.mxu0 0.0
          %908 = vmatprep.subr.mxu0 0.0
          %909 = vmatpush1.msra.mxu0 0.0
          %910 = vmatprep.subr.mxu0 0.0
          %911 = vmatpush1.msra.mxu0 0.0
          %912 = vmatprep.subr.mxu0 0.0
          %913 = vmatpush1.msra.mxu0 0.0
          %914 = vmatprep.subr.mxu0 0.0
          %915 = vmatpush1.msra.mxu0 0.0
          %916 = vmatprep.subr.mxu0 0.0
          %917 = vmatpush1.msra.mxu0 0.0
          %918 = vmatprep.subr.mxu0 0.0
          %919 = vmatpush1.msra.mxu0 0.0
          %920 = vmatprep.subr.mxu0 0.0
          %921 = vmatpush1.msra.mxu0 0.0
          %922 = vmatprep.subr.mxu0 0.0
          %923 = vmatpush1.msra.mxu0 0.0
          %924 = vmatprep.subr.mxu0 0.0
          %925 = vmatpush1.msra.mxu0 0.0
          %926 = vmatprep.subr.mxu0 0.0
          %927 = vmatpush1.msra.mxu0 0.0
          %928 = vmatprep.subr.mxu0 0.0
          %929 = vmatpush1.msra.mxu0 0.0
          %930 = vmatprep.subr.mxu0 0.0
          %931 = vmatpush1.msra.mxu0 0.0
          %932 = vmatprep.subr.mxu0 0.0
          %933 = vmatpush1.msra.mxu0 0.0
          %934 = vmatprep.subr.mxu0 0.0
          %935 = vmatpush1.msra.mxu0 0.0
          %936 = vmatprep.subr.mxu0 0.0
          %937 = vmatpush1.msra.mxu0 0.0
          %938 = vmatprep.subr.mxu0 0.0
          %939 = vmatpush1.msra.mxu0 0.0
          %940 = vmatprep.subr.mxu0 0.0
          %941 = vmatpush1.msra.mxu0 0.0
          %942 = vmatprep.subr.mxu0 0.0
          %943 = vmatpush1.msra.mxu0 0.0
          %944 = vmatprep.mubr.f32.mxu0 0.0
          %945 = vmatmul.mubr.f32.gmra.mrb[0].mxu0 %v878
          %v946 = vpop.f32.mrb[0].mxu0
          %v947 = vadd.f32 %v876, %v946
          %v948 = vpop.f32.mrb[0].mxu0
          %949 = vdwg.mxu0
          %vm950 = vcmask 16384
          %951 = vst.msk [vmem:[#allocation7] sm:$0x1] %vm950, %v947
        $region68: #{tpu_custom_call.1} parent=59 // pred_fallthru
          _
        // Predicated region
        $region69: #{tpu_custom_call.1} parent=59 // pred_check
          %p952 = pneg %p252
        $region70: #{tpu_custom_call.1} parent=59 // pred_check_branch
          %954 = sbr.rel (%p952) target = $region72
        $region71: #{tpu_custom_call.1} parent=59 // pred_region
          %s956 = ssub.s32 16, 16
          %957 = vsyncadd [#allocation8], %s956
          %s959 = sshll.u32 [#allocation7], 4
          %s960 = int_to_ptr.vmem [resolvable:$true] %s959
          %962 = dma.vmem_to_hbm [thread:$0]  %s960, 16, %s11, [#allocation8]
        $region72: #{tpu_custom_call.1} parent=59 // pred_fallthru
          _
        // Predicated region
        $region73: #{tpu_custom_call.1} parent=59 // pred_check
          %p963 = pneg %p252
        $region74: #{tpu_custom_call.1} parent=59 // pred_check_branch
          %965 = sbr.rel (%p963) target = $region76
        $region75: #{tpu_custom_call.1} parent=59 // pred_region
          %966 = dma.done [#allocation8], 16
        $region76: #{tpu_custom_call.1} parent=59 // pred_fallthru
          _
      $region60: #{tpu_custom_call.1} parent=5 // pred_fallthru
        _
      %p967 = scmp.le.s32.totalorder 2, %s19
      // Predicated region
      $region77: #{tpu_custom_call.1} parent=5 // pred_check
        %p968 = pneg %p967
      $region78: #{tpu_custom_call.1} parent=5 // pred_check_branch
        %970 = sbr.rel (%p968) target = $region80
      $region79: #{tpu_custom_call.1} parent=5 // pred_region
        %s971 = ssub.s32 %s19, 2
      $region80: #{tpu_custom_call.1} parent=5 // pred_fallthru
        _
    $region6: #{tpu_custom_call.1} parent=1 // loop_footer
      %s23 = sadd.s32 1, %s19
    $region7: #{tpu_custom_call.1} parent=1 // loop_footer_branch
      %18 = sbr.rel target = $region3
    $region8: #{tpu_custom_call.1} parent=1 // loop_exit
      _
    %972 = vsyncpa [#allocation8], 1
    %s973 = scalar_lea.sflag [#allocation8], 1
    %974 = vsyncpa %s973, 1

</llo_original>
